<compile_context>
chip_gen: v5e
topology: v5e:2x2
jax: 0.10.0
libtpu: 0.0.40
codegen_flags: <defaults>
</compile_context>

<pallas_src>
import jax
import jax.numpy as jnp
from jax.experimental import pallas as pl
from jax.experimental.pallas import tpu as pltpu

_EPS = 1e-12  # F.normalize default eps


def _normed_matmul_kernel(x_ref, w_ref, ix_ref, iw_ref, o_ref):
    # x_ref : (tm, tk)   matmul operands (bf16 or f32)
    # w_ref : (tk, tn)
    # ix_ref: (tm, 1)    1 / max(||x_row||, eps)   (f32)
    # iw_ref: (1, tn)    1 / max(||w_col||, eps)   (f32)
    # o_ref : (tm, tn)   f32 output tile, VMEM-resident across the K axis
    k = pl.program_id(2)

    @pl.when(k == 0)
    def _init():
        o_ref[...] = jnp.zeros_like(o_ref)

    o_ref[...] += jnp.dot(
        x_ref[...], w_ref[...], preferred_element_type=jnp.float32
    )

    @pl.when(k == pl.num_programs(2) - 1)
    def _finish():
        o_ref[...] = o_ref[...] * ix_ref[...] * iw_ref[...]


def _round_up(a, b):
    return (a + b - 1) // b * b


def _default_tile_config():
    """Pick tile sizes / VMEM limit from the detected TPU generation."""
    try:
        vmem_bytes = int(pltpu.get_tpu_info().vmem_capacity_bytes)
    except Exception:
        vmem_bytes = 64 << 20  # conservative (v7x-sized) fallback
    vmem_limit = (vmem_bytes * 3) // 4
    if vmem_bytes >= (96 << 20):
        # v5e / v6e: 128 MiB VMEM -> big output tiles, long K.
        return 512, 1024, 2048, vmem_limit
    # v7x: 64 MiB VMEM per TensorCore -> cap footprint.
    return 512, 512, 1024, vmem_limit


def _pick_tile(dim, target, quantum):
    """Largest tile <= target that divides `dim` (multiple of `quantum`),
    avoiding zero-padding where possible; fall back to `target` (=> pad)."""
    if dim <= target:
        return dim  # full extent: always a legal block shape, never padded
    target = max((target // quantum) * quantum, quantum)
    t = target
    best = None
    while t >= quantum:
        if dim % t == 0:
            best = t
            break
        t -= quantum
    # Accept the divisor only if it is not pathologically small.
    if best is not None and best * 4 >= target:
        return best
    return target  # caller zero-pads this axis


def normed_linear(x, weight, *, tm=None, tn=None, tk=None,
                  operand_dtype=jnp.bfloat16, vmem_limit_bytes=None):
    """out = normalize(x, dim=1) @ normalize(weight, dim=0)  (f32 output)."""
    M, K = x.shape
    K2, N = weight.shape
    assert K == K2

    d_tm, d_tn, d_tk, d_vmem = _default_tile_config()
    tm = d_tm if tm is None else tm
    tn = d_tn if tn is None else tn
    tk = d_tk if tk is None else tk
    vmem_limit_bytes = d_vmem if vmem_limit_bytes is None else vmem_limit_bytes

    # --- prepass: inverse L2 norms (rsqrt; matches clamp_min(eps) semantics)
    xf = x.astype(jnp.float32)
    wf = weight.astype(jnp.float32)
    inv_x = jax.lax.rsqrt(
        jnp.maximum(jnp.sum(xf * xf, axis=1, keepdims=True), _EPS * _EPS)
    )  # (M, 1)
    inv_w = jax.lax.rsqrt(
        jnp.maximum(jnp.sum(wf * wf, axis=0, keepdims=True), _EPS * _EPS)
    )  # (1, N)

    # --- matmul operands (bf16 default: half HBM bytes, MXU peak rate)
    xm = x.astype(operand_dtype)
    wm = weight.astype(operand_dtype)

    # --- tiles: prefer divisors of the real dims (no pad); pad as last resort
    tm_e = _pick_tile(M, tm, 8)     # sublane quantum for x / inv_x
    tn_e = _pick_tile(N, tn, 128)   # lane quantum for w / out / inv_w
    tk_e = _pick_tile(K, tk, 128)   # lane quantum for x, sublane for w
    Mp = _round_up(M, tm_e)
    Np = _round_up(N, tn_e)
    Kp = _round_up(K, tk_e)

    if (Mp, Kp) != (M, K):
        xm = jnp.pad(xm, ((0, Mp - M), (0, Kp - K)))
        inv_x = jnp.pad(inv_x, ((0, Mp - M), (0, 0)))
    if (Kp, Np) != (K, N):
        wm = jnp.pad(wm, ((0, Kp - K), (0, Np - N)))
        inv_w = jnp.pad(inv_w, ((0, 0), (0, Np - N)))

    grid = (Mp // tm_e, Np // tn_e, Kp // tk_e)

    op_bytes = jnp.dtype(operand_dtype).itemsize
    cost = pl.CostEstimate(
        flops=2 * Mp * Np * Kp,
        transcendentals=0,
        bytes_accessed=(Mp * Kp + Kp * Np) * op_bytes
        + Mp * Np * 4
        + (Mp + Np) * 4,
    )

    out = pl.pallas_call(
        _normed_matmul_kernel,
        out_shape=jax.ShapeDtypeStruct((Mp, Np), jnp.float32),
        grid_spec=pltpu.PrefetchScalarGridSpec(
            num_scalar_prefetch=0,
            grid=grid,
            in_specs=[
                pl.BlockSpec((tm_e, tk_e), lambda i, j, k: (i, k)),
                pl.BlockSpec((tk_e, tn_e), lambda i, j, k: (k, j)),
                pl.BlockSpec((tm_e, 1), lambda i, j, k: (i, 0)),
                pl.BlockSpec((1, tn_e), lambda i, j, k: (0, j)),
            ],
            out_specs=pl.BlockSpec((tm_e, tn_e), lambda i, j, k: (i, j)),
        ),
        compiler_params=pltpu.CompilerParams(
            dimension_semantics=("parallel", "parallel", "arbitrary"),
            vmem_limit_bytes=vmem_limit_bytes,
        ),
        cost_estimate=cost,
    )(xm, wm, inv_x, inv_w)

    if (Mp, Np) != (M, N):
        out = out[:M, :N]
    return out


def init_weight(key, in_features, out_features):
    """Mimic: uniform_(-1, 1).renorm_(2, 1, 1e-05).mul_(100000.0)."""
    w = jax.random.uniform(
        key, (in_features, out_features), minval=-1.0, maxval=1.0,
        dtype=jnp.float32
    )
    # renorm_(2, dim=1, maxnorm=1e-5): clip each column's L2 norm to <= 1e-5
    col_norm = jnp.sqrt(jnp.sum(w * w, axis=0, keepdims=True))
    scale = jnp.where(col_norm > 1e-5, 1e-5 / (col_norm + 1e-7), 1.0)
    w = w * scale
    # .mul_(1e5): columns end up approximately unit-norm
    return w * 1e5


def reference(x, weight):
    xn = x / jnp.maximum(
        jnp.sqrt(jnp.sum(x * x, axis=1, keepdims=True)), _EPS
    )
    wn = weight / jnp.maximum(
        jnp.sqrt(jnp.sum(weight * weight, axis=0, keepdims=True)), _EPS
    )
    return xn @ wn


if __name__ == "__main__":
    key = jax.random.PRNGKey(0)
    kx, kw, kx2, kw2 = jax.random.split(key, 4)

    # --- small shape matching the module's classifier use (batch, Cin, Cout)
    batch, in_features, out_features = 16, 32, 256
    x = jax.random.normal(kx, (batch, in_features), dtype=jnp.float32)
    weight = init_weight(kw, in_features, out_features)
    ref = reference(x, weight)

    # f32 operands: tight check against the PyTorch-equivalent reference.
    out_f32 = jax.block_until_ready(
        normed_linear(x, weight, operand_dtype=jnp.float32)
    )
    assert out_f32.shape == (batch, out_features)
    assert jnp.allclose(out_f32, ref, atol=1e-5, rtol=1e-5), float(
        jnp.max(jnp.abs(out_f32 - ref))
    )

    # bf16 operands (default fast path): cosine sims are bounded in [-1, 1],
    # so an absolute tolerance check is appropriate.
    out_bf16 = jax.block_until_ready(normed_linear(x, weight))
    assert out_bf16.shape == (batch, out_features)
    assert jnp.allclose(out_bf16, ref, atol=1e-2), float(
        jnp.max(jnp.abs(out_bf16 - ref))
    )

    # --- multi-tile / ragged-shape check: exercises divisor tiling (M=192 ->
    # tm=96), K padding (320 -> 384), and in-place K accumulation (grid k>1).
    M2, K2, N2 = 192, 320, 512
    x2 = jax.random.normal(kx2, (M2, K2), dtype=jnp.float32)
    w2 = jax.random.normal(kw2, (K2, N2), dtype=jnp.float32)
    ref2 = reference(x2, w2)
    out2 = jax.block_until_ready(
        normed_linear(x2, w2, tm=128, tn=256, tk=128,
                      operand_dtype=jnp.float32)
    )
    assert out2.shape == (M2, N2)
    assert jnp.allclose(out2, ref2, atol=1e-5, rtol=1e-5), float(
        jnp.max(jnp.abs(out2 - ref2))
    )

    print("KERNEL_OK")
</pallas_src>

<mosaic_0001>
module attributes {stable_mosaic.version = 11 : i64} {
  func.func @_normed_matmul_kernel(%arg0: i32, %arg1: i32, %arg2: i32, %arg3: memref<16x32xf32, #tpu.memory_space<vmem>>, %arg4: memref<32x256xf32, #tpu.memory_space<vmem>>, %arg5: memref<16x1xf32, #tpu.memory_space<vmem>>, %arg6: memref<1x256xf32, #tpu.memory_space<vmem>>, %arg7: memref<16x256xf32, #tpu.memory_space<vmem>>) attributes {dimension_semantics = [#tpu.dimension_semantics<parallel>, #tpu.dimension_semantics<parallel>, #tpu.dimension_semantics<arbitrary>], iteration_bounds = array<i64: 1, 1, 1>, scalar_prefetch = 0 : i64, scratch_operands = 0 : i64, tpu.core_type = #tpu.core_type<tc>, window_params = [{transform_indices = @transform_0, window_bounds = array<i64: 16, 32>}, {transform_indices = @transform_1, window_bounds = array<i64: 32, 256>}, {transform_indices = @transform_2, window_bounds = array<i64: 16, 1>}, {transform_indices = @transform_3, window_bounds = array<i64: 1, 256>}, {transform_indices = @transform_4, window_bounds = array<i64: 16, 256>}]} {
    %c0_i32 = arith.constant 0 : i32
    %0 = arith.cmpi eq, %arg2, %c0_i32 : i32
    %1 = arith.extui %0 : i1 to i32
    %c0_i32_0 = arith.constant 0 : i32
    %2 = arith.cmpi ne, %1, %c0_i32_0 : i32
    scf.if %2 {
      %cst_10 = arith.constant 0.000000e+00 : f32
      %12 = vector.broadcast %cst_10 : f32 to vector<16x256xf32>
      %c0_11 = arith.constant 0 : index
      %c0_12 = arith.constant 0 : index
      %13 = vector.load %arg7[%c0_11, %c0_12] : memref<16x256xf32, #tpu.memory_space<vmem>>, vector<16x256xf32>
      tpu.vector_store %arg7[%c0_11, %c0_12], %12 {strides = array<i32>} : memref<16x256xf32, #tpu.memory_space<vmem>>, vector<16x256xf32>,
    } else {
    }
    %c0 = arith.constant 0 : index
    %c0_1 = arith.constant 0 : index
    %3 = vector.load %arg7[%c0, %c0_1] : memref<16x256xf32, #tpu.memory_space<vmem>>, vector<16x256xf32>
    %c0_2 = arith.constant 0 : index
    %c0_3 = arith.constant 0 : index
    %4 = vector.load %arg3[%c0_2, %c0_3] : memref<16x32xf32, #tpu.memory_space<vmem>>, vector<16x32xf32>
    %c0_4 = arith.constant 0 : index
    %c0_5 = arith.constant 0 : index
    %5 = vector.load %arg4[%c0_4, %c0_5] : memref<32x256xf32, #tpu.memory_space<vmem>>, vector<32x256xf32>
    %cst = arith.constant dense<0.000000e+00> : vector<16x256xf32>
    %6 = tpu.matmul %4, %5, %cst {dimension_numbers = #tpu.dot_dimension_numbers<[1], [0], [0], [1], [0, 0, 1, 1], [], []>} : vector<16x32xf32>, vector<32x256xf32>, vector<16x256xf32> -> vector<16x256xf32>
    %7 = arith.addf %3, %6 : vector<16x256xf32>
    %c0_6 = arith.constant 0 : index
    %c0_7 = arith.constant 0 : index
    %8 = vector.load %arg7[%c0_6, %c0_7] : memref<16x256xf32, #tpu.memory_space<vmem>>, vector<16x256xf32>
    tpu.vector_store %arg7[%c0_6, %c0_7], %7 {strides = array<i32>} : memref<16x256xf32, #tpu.memory_space<vmem>>, vector<16x256xf32>,
    %c0_i32_8 = arith.constant 0 : i32
    %9 = arith.cmpi eq, %arg2, %c0_i32_8 : i32
    %10 = arith.extui %9 : i1 to i32
    %c0_i32_9 = arith.constant 0 : i32
    %11 = arith.cmpi ne, %10, %c0_i32_9 : i32
    scf.if %11 {
      %c0_10 = arith.constant 0 : index
      %c0_11 = arith.constant 0 : index
      %12 = vector.load %arg7[%c0_10, %c0_11] : memref<16x256xf32, #tpu.memory_space<vmem>>, vector<16x256xf32>
      %c0_12 = arith.constant 0 : index
      %c0_13 = arith.constant 0 : index
      %13 = vector.load %arg5[%c0_12, %c0_13] : memref<16x1xf32, #tpu.memory_space<vmem>>, vector<16x1xf32>
      %14 = vector.broadcast %13 : vector<16x1xf32> to vector<16x256xf32>
      %15 = arith.mulf %12, %14 : vector<16x256xf32>
      %c0_14 = arith.constant 0 : index
      %c0_15 = arith.constant 0 : index
      %16 = vector.load %arg6[%c0_14, %c0_15] : memref<1x256xf32, #tpu.memory_space<vmem>>, vector<1x256xf32>
      %17 = vector.broadcast %16 : vector<1x256xf32> to vector<16x256xf32>
      %18 = arith.mulf %15, %17 : vector<16x256xf32>
      %c0_16 = arith.constant 0 : index
      %c0_17 = arith.constant 0 : index
      %19 = vector.load %arg7[%c0_16, %c0_17] : memref<16x256xf32, #tpu.memory_space<vmem>>, vector<16x256xf32>
      tpu.vector_store %arg7[%c0_16, %c0_17], %18 {strides = array<i32>} : memref<16x256xf32, #tpu.memory_space<vmem>>, vector<16x256xf32>,
    } else {
    }
    return
  }
  func.func @transform_0(%arg0: i32, %arg1: i32, %arg2: i32) -> (i32, i32) {
    %c0_i32 = arith.constant 0 : i32
    return %arg0, %arg2 : i32, i32
  }
  func.func @transform_1(%arg0: i32, %arg1: i32, %arg2: i32) -> (i32, i32) {
    %c0_i32 = arith.constant 0 : i32
    return %arg2, %arg1 : i32, i32
  }
  func.func @transform_2(%arg0: i32, %arg1: i32, %arg2: i32) -> (i32, i32) {
    %c0_i32 = arith.constant 0 : i32
    %c0_i32_0 = arith.constant 0 : i32
    return %arg0, %c0_i32 : i32, i32
  }
  func.func @transform_3(%arg0: i32, %arg1: i32, %arg2: i32) -> (i32, i32) {
    %c0_i32 = arith.constant 0 : i32
    %c0_i32_0 = arith.constant 0 : i32
    return %c0_i32, %arg1 : i32, i32
  }
  func.func @transform_4(%arg0: i32, %arg1: i32, %arg2: i32) -> (i32, i32) {
    %c0_i32 = arith.constant 0 : i32
    return %arg0, %arg1 : i32, i32
  }
}

</mosaic_0001>

<llo_original>
// kernel: tpu_custom_call.1
$region0: #{tpu_custom_call.1}
  #allocation0 [shape = 'u32[]', space=smem, size = 0x4, offset = 0x4, fixed_abs, tag = 'smem constant byte address 0x4 - core index']
  #allocation1 [shape = 'u32[72,128]{1,0:T(1,128)}', space=vmem, size = 0x9000, scoped, tag = 'internal scratch']
  %s0 = inlined_call_operand.vmem [shape: f32[16,32], index: 0, kind: input, shape index: {}]
  %s1 = inlined_call_operand.hbm [shape: f32[32,256], index: 1, kind: input, shape index: {}]
  %s2 = inlined_call_operand.vmem [shape: f32[16,1], index: 2, kind: input, shape index: {}]
  %s3 = inlined_call_operand.vmem [shape: f32[1,256], index: 3, kind: input, shape index: {}]
  %s4 = inlined_call_operand.hbm [shape: f32[16,256], index: 4, kind: output, shape index: {}]
  %s5 = sld [smem:[#allocation0]]
  $region38: #{tpu_custom_call.1} parent=0
    _
  %s7 = ssub.s32 1, %s5
  %s8 = scalar_select 0, %s7, %s5
  $region1: #{tpu_custom_call.1} parent=0
    #allocation2 [shape = 'u8[32768]{0}', space=vmem, size = 0x8000, scoped, tag = 'input window, operand 1, single buffered']
    #allocation3 [shape = 's32[1]{0}', space=sflag, size = 0x4, scoped, tag = 'scoped memory for tpu_custom_call.1']
    #allocation4 [shape = 's32[1]{0}', space=sflag, size = 0x4, scoped, tag = 'scoped memory for tpu_custom_call.1']
    #allocation5 [shape = 'u8[16384]{0}', space=vmem, size = 0x4000, scoped, tag = 'output window, operand 0, single buffered']
    %9 = vsyncpa [#allocation3], 0
    %10 = vsyncpa [#allocation4], 0
    // Predicated region
    $region2: #{tpu_custom_call.1} parent=1 // pred_check
      _
    $region3: #{tpu_custom_call.1} parent=1 // pred_check_branch
      %12 = sbr.rel (0) target = $region5
    $region4: #{tpu_custom_call.1} parent=1 // pred_region
      _
    $region5: #{tpu_custom_call.1} parent=1 // pred_fallthru
      _
    // Predicated region
    $region6: #{tpu_custom_call.1} parent=1 // pred_check
      _
    $region7: #{tpu_custom_call.1} parent=1 // pred_check_branch
      %14 = sbr.rel (0) target = $region9
    $region8: #{tpu_custom_call.1} parent=1 // pred_region
      %16 = vsyncadd [#allocation3], 0
      %s17 = sshll.u32 %s1, 4
      %s18 = int_to_ptr.hbm [resolvable:$true] %s17
      %s19 = sshll.u32 [#allocation2], 4
      %s20 = int_to_ptr.vmem [resolvable:$true] %s19
      %25 = dma.hbm_to_vmem [thread:$0]  %s18, 1024, %s20, [#allocation3], 256, 256, 16
    $region9: #{tpu_custom_call.1} parent=1 // pred_fallthru
      _
    // Predicated region
    $region10: #{tpu_custom_call.1} parent=1 // pred_check
      _
    $region11: #{tpu_custom_call.1} parent=1 // pred_check_branch
      %27 = sbr.rel (0) target = $region13
    $region12: #{tpu_custom_call.1} parent=1 // pred_region
      _
    $region13: #{tpu_custom_call.1} parent=1 // pred_fallthru
      _
    // Predicated region
    $region14: #{tpu_custom_call.1} parent=1 // pred_check
      _
    $region15: #{tpu_custom_call.1} parent=1 // pred_check_branch
      %29 = sbr.rel (0) target = $region17
    $region16: #{tpu_custom_call.1} parent=1 // pred_region
      _
    $region17: #{tpu_custom_call.1} parent=1 // pred_fallthru
      _
    // Predicated region
    $region18: #{tpu_custom_call.1} parent=1 // pred_check
      _
    $region19: #{tpu_custom_call.1} parent=1 // pred_check_branch
      %31 = sbr.rel (0) target = $region21
    $region20: #{tpu_custom_call.1} parent=1 // pred_region
      %33 = dma.done [#allocation3], 1024
    $region21: #{tpu_custom_call.1} parent=1 // pred_fallthru
      _
    %p34 = scmp.eq.s32.totalorder 0, 0
    // Predicated region
    $region22: #{tpu_custom_call.1} parent=1 // pred_check
      %p35 = pneg %p34
    $region23: #{tpu_custom_call.1} parent=1 // pred_check_branch
      %37 = sbr.rel (%p35) target = $region25
    $region24: #{tpu_custom_call.1} parent=1 // pred_region
      %38 = vst [vmem:[#allocation5] sm:$0xff] 0.0
      %39 = vst [vmem:[#allocation5 + $0x8] sm:$0xff] 0.0
      %40 = vst [vmem:[#allocation5 + $0x10] sm:$0xff] 0.0
      %41 = vst [vmem:[#allocation5 + $0x18] sm:$0xff] 0.0
    $region25: #{tpu_custom_call.1} parent=1 // pred_fallthru
      _
    %v42 = vld [vmem:[#allocation5] sm:$0xff]
    %v43 = vld [vmem:[#allocation5 + $0x8] sm:$0xff]
    %v44 = vld [vmem:[#allocation5 + $0x10] sm:$0xff]
    %v45 = vld [vmem:[#allocation5 + $0x18] sm:$0xff]
    %v46 = vld [vmem:[%s0] sm:$0xff]
    %v47 = vld [vmem:[%s0 + $0x8] sm:$0xff]
    %v48 = vld [vmem:[#allocation2] sm:$0xff]
    %v49 = vld [vmem:[#allocation2 + $0x8] sm:$0xff]
    %v50 = vld [vmem:[#allocation2 + $0x10] sm:$0xff]
    %v51 = vld [vmem:[#allocation2 + $0x18] sm:$0xff]
    %v52 = vld [vmem:[#allocation2 + $0x20] sm:$0xff]
    %v53 = vld [vmem:[#allocation2 + $0x28] sm:$0xff]
    %v54 = vld [vmem:[#allocation2 + $0x30] sm:$0xff]
    %v55 = vld [vmem:[#allocation2 + $0x38] sm:$0xff]
    %vm56 = vcmask 261120
    %v58 = vsel %vm56, %v46, 0
    %v61 = vsel %vm56, %v47, 0
    %63 = vmatpush.msra.mxu0 0.0
    %64 = vmatpush.msra.mxu0 0.0
    %65 = vmatpush.msra.mxu0 0.0
    %66 = vmatpush.msra.mxu0 0.0
    %67 = vmatpush.msra.mxu0 0.0
    %68 = vmatpush.msra.mxu0 0.0
    %69 = vmatpush.msra.mxu0 0.0
    %70 = vmatpush.msra.mxu0 0.0
    %71 = vmatpush.msra.mxu0 0.0
    %72 = vmatpush.msra.mxu0 0.0
    %73 = vmatpush.msra.mxu0 0.0
    %74 = vmatpush.msra.mxu0 0.0
    %75 = vmatpush.msra.mxu0 %v54
    %76 = vmatpush.msra.mxu0 %v52
    %77 = vmatpush.msra.mxu0 %v50
    %78 = vmatpush.msra.mxu0 %v48
    %79 = vmatmul.f32.gmra.mxu0 %v58
    %v80 = vpop.f32.mrf.mxu0
    %v81 = vadd.f32 0.0, %v80
    %82 = vmatmul.f32.gmra.mxu0 %v61
    %v83 = vpop.f32.mrf.mxu0
    %v84 = vadd.f32 0.0, %v83
    %85 = vdwg.mxu0
    %86 = vmatpush.msra.mxu0 0.0
    %87 = vmatpush.msra.mxu0 0.0
    %88 = vmatpush.msra.mxu0 0.0
    %89 = vmatpush.msra.mxu0 0.0
    %90 = vmatpush.msra.mxu0 0.0
    %91 = vmatpush.msra.mxu0 0.0
    %92 = vmatpush.msra.mxu0 0.0
    %93 = vmatpush.msra.mxu0 0.0
    %94 = vmatpush.msra.mxu0 0.0
    %95 = vmatpush.msra.mxu0 0.0
    %96 = vmatpush.msra.mxu0 0.0
    %97 = vmatpush.msra.mxu0 0.0
    %98 = vmatpush.msra.mxu0 %v55
    %99 = vmatpush.msra.mxu0 %v53
    %100 = vmatpush.msra.mxu0 %v51
    %101 = vmatpush.msra.mxu0 %v49
    %102 = vmatmul.f32.gmra.mxu0 %v58
    %v103 = vpop.f32.mrf.mxu0
    %v104 = vadd.f32 0.0, %v103
    %105 = vmatmul.f32.gmra.mxu0 %v61
    %v106 = vpop.f32.mrf.mxu0
    %v107 = vadd.f32 0.0, %v106
    %108 = vdwg.mxu0
    %v109 = vadd.f32 %v42, %v81
    %v110 = vadd.f32 %v43, %v104
    %v111 = vadd.f32 %v44, %v84
    %v112 = vadd.f32 %v45, %v107
    %113 = vst [vmem:[#allocation5] sm:$0xff] %v109
    %114 = vst [vmem:[#allocation5 + $0x8] sm:$0xff] %v110
    %115 = vst [vmem:[#allocation5 + $0x10] sm:$0xff] %v111
    %116 = vst [vmem:[#allocation5 + $0x18] sm:$0xff] %v112
    // Predicated region
    $region26: #{tpu_custom_call.1} parent=1 // pred_check
      %p117 = pneg %p34
    $region27: #{tpu_custom_call.1} parent=1 // pred_check_branch
      %119 = sbr.rel (%p117) target = $region29
    $region28: #{tpu_custom_call.1} parent=1 // pred_region
      %v120 = vld [vmem:[#allocation5] sm:$0xff]
      %v121 = vld [vmem:[#allocation5 + $0x8] sm:$0xff]
      %v122 = vld [vmem:[#allocation5 + $0x10] sm:$0xff]
      %v123 = vld [vmem:[#allocation5 + $0x18] sm:$0xff]
      %v124 = vld [vmem:[%s2] sm:$0xff]
      %v125 = vld [vmem:[%s2 + $0x8] sm:$0xff]
      %127 = vset.pattern.permute.xlu0 0
      %128 = vperm.xlu0 %127, %v124
      %v129 = vpop.permute.xlu0 %128
      %132 = vset.pattern.permute.xlu0 0
      %133 = vperm.xlu0 %132, %v125
      %v134 = vpop.permute.xlu0 %133
      %v136 = vmul.f32 %v120, %v129
      %v137 = vmul.f32 %v121, %v129
      %v138 = vmul.f32 %v122, %v134
      %v139 = vmul.f32 %v123, %v134
      %v140 = vld [vmem:[%s3] sm:$0x3]
      %v142 = vperm.slane %v140, 0
      %v143 = vperm.slane %v140, 1
      %v146 = vmul.f32 %v136, %v142
      %v147 = vmul.f32 %v137, %v143
      %v148 = vmul.f32 %v138, %v142
      %v149 = vmul.f32 %v139, %v143
      %150 = vst [vmem:[#allocation5] sm:$0xff] %v146
      %151 = vst [vmem:[#allocation5 + $0x8] sm:$0xff] %v147
      %152 = vst [vmem:[#allocation5 + $0x10] sm:$0xff] %v148
      %153 = vst [vmem:[#allocation5 + $0x18] sm:$0xff] %v149
    $region29: #{tpu_custom_call.1} parent=1 // pred_fallthru
      _
    // Predicated region
    $region30: #{tpu_custom_call.1} parent=1 // pred_check
      _
    $region31: #{tpu_custom_call.1} parent=1 // pred_check_branch
      %155 = sbr.rel (0) target = $region33
    $region32: #{tpu_custom_call.1} parent=1 // pred_region
      %157 = vsyncadd [#allocation4], 0
      %s158 = sshll.u32 [#allocation5], 4
      %s159 = int_to_ptr.vmem [resolvable:$true] %s158
      %s160 = sshll.u32 %s4, 4
      %s161 = int_to_ptr.hbm [resolvable:$true] %s160
      %166 = dma.vmem_to_hbm [thread:$0]  %s159, 512, %s161, [#allocation4], 256, 256, 16
    $region33: #{tpu_custom_call.1} parent=1 // pred_fallthru
      _
    // Predicated region
    $region34: #{tpu_custom_call.1} parent=1 // pred_check
      _
    $region35: #{tpu_custom_call.1} parent=1 // pred_check_branch
      %168 = sbr.rel (0) target = $region37
    $region36: #{tpu_custom_call.1} parent=1 // pred_region
      %170 = dma.done [#allocation4], 512
    $region37: #{tpu_custom_call.1} parent=1 // pred_fallthru
      _
    %171 = vsyncpa [#allocation3], 1
    %172 = vsyncpa [#allocation4], 1

</llo_original>
